<compile_context>
chip_gen: v7x
topology: tpu7x:2x2x1
jax: 0.10.0
libtpu: 0.0.40
codegen_flags: <defaults>
</compile_context>

<pallas_src>
import functools

import jax
import jax.numpy as jnp
from jax.experimental import pallas as pl
from jax.experimental.pallas import tpu as pltpu


_VMEM_LIMIT_BYTES = 48 * 1024 * 1024  # < 64 MiB physical on v7x, < 128 MiB on v5e/v6e.


def _nll_smooth_kernel(x_ref, tgt_ref, out_ref, acc_ref, *,
                       confidence, smoothing, n_rows):
    p = pl.program_id(0)            # core-split axis
    i = pl.program_id(1)            # reduction axis (arbitrary)
    n_inner = pl.num_programs(1)

    @pl.when(i == 0)
    def _():
        acc_ref[...] = jnp.zeros_like(acc_ref)

    tile_n, c = x_ref.shape
    x = x_ref[...].astype(jnp.float32)          # (tile_n, C)
    tgt = tgt_ref[...]                          # (tile_n, 1) int32

    # Numerically stable logsumexp (exp(x - m) <= 1, safe even on padded rows).
    m = jnp.max(x, axis=-1, keepdims=True)
    lse = m + jnp.log(jnp.sum(jnp.exp(x - m), axis=-1, keepdims=True))  # (tile_n, 1)

    # Fused target gather + smoothing mean (correctness-preserving algebra):
    #   loss = conf*(lse - x[tgt]) + smooth*(lse - mean(x))
    #        = lse - sum_c w_c * x_c,   w_c = smooth/C + conf*[c == tgt]
    # (conf + smooth == 1).  One weighted lane reduction instead of a
    # where-sum gather plus a separate mean.
    # Note: out-of-range targets contribute only the smoothing term (the
    # original module has no ignore_index, so valid inputs are assumed).
    col = jax.lax.broadcasted_iota(jnp.int32, x.shape, 1)               # (tile_n, C)
    base_w = jnp.float32(smoothing / c)
    w = jnp.where(col == tgt, base_w + jnp.float32(confidence), base_w)
    loss = lse - jnp.sum(w * x, axis=-1, keepdims=True)                 # (tile_n, 1)

    # Mask rows past the true batch size (tail tile and/or padded core split).
    # Keep this a *select*: garbage/NaN in the padded region must not leak.
    block_idx = p * n_inner + i
    row = block_idx * tile_n + jax.lax.broadcasted_iota(jnp.int32, (tile_n, 1), 0)
    loss = jnp.where(row < n_rows, loss, 0.0)

    # Cheap elementwise accumulation; no per-step cross-sublane reduce.
    acc_ref[...] += loss

    # Single reduce + lane-dense writeback per core, at the last inner step.
    @pl.when(i == n_inner - 1)
    def _():
        out_ref[...] = jnp.full(out_ref.shape, jnp.sum(acc_ref[...]), out_ref.dtype)


def _choose_tile_n(n, c, itemsize):
    """Largest batch tile whose per-step VMEM working set fits the budget.

    Per-row accounting:
      * double-buffered input tile:                    2 * C * itemsize
      * f32 upcast + exp / weight intermediates:      ~4 * C * 4
      * lane-padded (tile_n, 1) buffers
        (target double-buffer + f32 accumulator):      3 * 128 * 4
    Budget ~40 MiB -> fits under the explicit 48 MiB scoped limit on all
    generations (v7x: 64 MiB physical; v5e/v6e: 128 MiB physical).
    """
    budget = 40 * 1024 * 1024
    per_row = 2 * c * itemsize + 4 * c * 4 + 3 * 128 * 4
    max_rows = max(8, budget // per_row)
    tile_n = min(n, max_rows)
    if tile_n < n:
        tile_n = max(8, (tile_n // 8) * 8)   # keep the sublane dim a multiple of 8
    return tile_n


def _num_tensorcores():
    """2 on v7x (2 TensorCores/chip), 1 on earlier generations."""
    try:
        kind = jax.devices()[0].device_kind.lower()
    except Exception:
        return 1
    return 2 if ("v7" in kind or "tpu7" in kind) else 1


def _nll_smooth_call(x, tgt2d, *, smoothing, tile_n, n_cores, semantics):
    N, C = x.shape
    confidence = 1.0 - smoothing

    total_blocks = pl.cdiv(N, tile_n)
    bpc = pl.cdiv(total_blocks, n_cores)      # inner (reduction) blocks per core

    def row_block_map(p, i):
        # Clamp so padded grid steps never DMA out of bounds; their rows are
        # masked out inside the kernel anyway.
        return (jnp.minimum(p * bpc + i, total_blocks - 1), 0)

    kernel = functools.partial(
        _nll_smooth_kernel,
        confidence=confidence,
        smoothing=smoothing,
        n_rows=N,
    )

    itemsize = x.dtype.itemsize
    cost = pl.CostEstimate(
        flops=6 * N * C,
        transcendentals=N * C,
        bytes_accessed=N * C * itemsize + N * 4 + n_cores * 8 * 128 * 4,
    )

    # One (8,128)-shaped partial-sum slab per core (lane-dense, layout-legal).
    return pl.pallas_call(
        kernel,
        out_shape=jax.ShapeDtypeStruct((n_cores, 8, 128), jnp.float32),
        grid_spec=pltpu.PrefetchScalarGridSpec(
            num_scalar_prefetch=0,
            grid=(n_cores, bpc),
            in_specs=[
                pl.BlockSpec((tile_n, C), row_block_map),
                pl.BlockSpec((tile_n, 1), row_block_map),
            ],
            out_specs=pl.BlockSpec((1, 8, 128), lambda p, i: (p, 0, 0)),
            scratch_shapes=[pltpu.VMEM((tile_n, 1), jnp.float32)],
        ),
        compiler_params=pltpu.CompilerParams(
            dimension_semantics=semantics,
            vmem_limit_bytes=_VMEM_LIMIT_BYTES,
        ),
        cost_estimate=cost,
    )(x, tgt2d)


def nll_smooth(x, target, smoothing=0.05, tile_n=None):
    """NLL loss with label smoothing. x: (N, C) float, target: (N,) int."""
    N, C = x.shape
    if tile_n is None:
        tile_n = _choose_tile_n(N, C, x.dtype.itemsize)

    tgt2d = target.astype(jnp.int32).reshape(N, 1)

    n_cores = _num_tensorcores()
    if n_cores > 1 and hasattr(pltpu, "CORE_PARALLEL"):
        # Shard the leading grid axis across the two TensorCores on v7x.
        sem = (pltpu.CORE_PARALLEL, getattr(pltpu, "ARBITRARY", "arbitrary"))
        try:
            partials = _nll_smooth_call(
                x, tgt2d, smoothing=smoothing, tile_n=tile_n,
                n_cores=n_cores, semantics=sem)
            return jnp.sum(partials[:, 0, 0]) / N
        except Exception:
            pass  # fall back to the single-core grid below (eager-mode safety net)

    partials = _nll_smooth_call(
        x, tgt2d, smoothing=smoothing, tile_n=tile_n,
        n_cores=1, semantics=("arbitrary", "arbitrary"))
    # Divide by N exactly once, outside the kernel.
    return jnp.sum(partials[:, 0, 0]) / N


def _reference(x, target, smoothing=0.05):
    # Pure-JAX reference mirroring the PyTorch module.
    logprobs = jax.nn.log_softmax(x.astype(jnp.float32), axis=-1)
    nll = -jnp.take_along_axis(logprobs, target[:, None].astype(jnp.int32), axis=-1)[:, 0]
    smooth = -jnp.mean(logprobs, axis=-1)
    loss = (1.0 - smoothing) * nll + smoothing * smooth
    return jnp.mean(loss)


if __name__ == "__main__":
    key = jax.random.PRNGKey(0)
    kx, kt = jax.random.split(key)

    # Small shapes consistent with the module: batch=16, classes=128.
    N, C = 16, 128
    x = jax.random.normal(kx, (N, C), dtype=jnp.float32)
    target = jax.random.randint(kt, (N,), 0, C, dtype=jnp.int32)

    loss = jax.block_until_ready(nll_smooth(x, target, smoothing=0.05))
    ref = _reference(x, target, smoothing=0.05)
    assert jnp.allclose(loss, ref, atol=1e-5, rtol=1e-5), (loss, ref)

    # Second case: exercises cdiv grid + tail masking (N not a multiple of the
    # tile), a non-128-multiple class count, and an explicit small tile.
    N2, C2 = 44, 160
    x2 = jax.random.normal(kx, (N2, C2), dtype=jnp.float32)
    t2 = jax.random.randint(kt, (N2,), 0, C2, dtype=jnp.int32)
    loss2 = jax.block_until_ready(nll_smooth(x2, t2, smoothing=0.1, tile_n=8))
    ref2 = _reference(x2, t2, smoothing=0.1)
    assert jnp.allclose(loss2, ref2, atol=1e-5, rtol=1e-5), (loss2, ref2)

    # Third case: bf16 logits (the bandwidth-saving path) with an auto tile.
    N3, C3 = 200, 128
    x3 = jax.random.normal(kx, (N3, C3), dtype=jnp.float32).astype(jnp.bfloat16)
    t3 = jax.random.randint(kt, (N3,), 0, C3, dtype=jnp.int32)
    loss3 = jax.block_until_ready(nll_smooth(x3, t3, smoothing=0.05))
    ref3 = _reference(x3.astype(jnp.float32), t3, smoothing=0.05)
    assert jnp.allclose(loss3, ref3, atol=2e-2, rtol=2e-2), (loss3, ref3)

    print("KERNEL_OK")
</pallas_src>

<mosaic_0001>
module attributes {stable_mosaic.version = 11 : i64} {
  func.func @_nll_smooth_kernel(%arg0: i32, %arg1: i32, %arg2: memref<16x128xf32, #tpu.memory_space<vmem>>, %arg3: memref<16x1xi32, #tpu.memory_space<vmem>>, %arg4: memref<1x8x128xf32, #tpu.memory_space<vmem>>, %arg5: memref<16x1xf32, #tpu.memory_space<vmem>>) attributes {dimension_semantics = [#tpu.dimension_semantics<arbitrary>, #tpu.dimension_semantics<arbitrary>], iteration_bounds = array<i64: 1, 1>, scalar_prefetch = 0 : i64, scratch_operands = 1 : i64, tpu.core_type = #tpu.core_type<tc>, window_params = [{transform_indices = @transform_0, window_bounds = array<i64: 16, 128>}, {transform_indices = @transform_1, window_bounds = array<i64: 16, 1>}, {transform_indices = @transform_2, window_bounds = array<i64: 1, 8, 128>}]} {
    %c0_i32 = arith.constant 0 : i32
    %0 = arith.cmpi eq, %arg1, %c0_i32 : i32
    %1 = arith.extui %0 : i1 to i32
    %c0_i32_0 = arith.constant 0 : i32
    %2 = arith.cmpi ne, %1, %c0_i32_0 : i32
    scf.if %2 {
      %cst_17 = arith.constant 0.000000e+00 : f32
      %41 = vector.broadcast %cst_17 : f32 to vector<16x1xf32>
      %c0_18 = arith.constant 0 : index
      %c0_19 = arith.constant 0 : index
      %42 = vector.load %arg5[%c0_18, %c0_19] : memref<16x1xf32, #tpu.memory_space<vmem>>, vector<16x1xf32>
      tpu.vector_store %arg5[%c0_18, %c0_19], %41 {strides = array<i32>} : memref<16x1xf32, #tpu.memory_space<vmem>>, vector<16x1xf32>,
    } else {
    }
    %c0 = arith.constant 0 : index
    %c0_1 = arith.constant 0 : index
    %3 = vector.load %arg2[%c0, %c0_1] : memref<16x128xf32, #tpu.memory_space<vmem>>, vector<16x128xf32>
    %c0_2 = arith.constant 0 : index
    %c0_3 = arith.constant 0 : index
    %4 = vector.load %arg3[%c0_2, %c0_3] : memref<16x1xi32, #tpu.memory_space<vmem>>, vector<16x1xi32>
    %cst = arith.constant dense<0xFF800000> : vector<16xf32>
    %5 = vector.multi_reduction <maximumf>, %3, %cst [1] : vector<16x128xf32> to vector<16xf32>
    %6 = vector.shape_cast %5 : vector<16xf32> to vector<16x1xf32>
    %7 = vector.broadcast %6 : vector<16x1xf32> to vector<16x128xf32>
    %8 = arith.subf %3, %7 : vector<16x128xf32>
    %9 = math.exp %8 : vector<16x128xf32>
    %cst_4 = arith.constant dense<0.000000e+00> : vector<16xf32>
    %10 = vector.multi_reduction <add>, %9, %cst_4 [1] : vector<16x128xf32> to vector<16xf32>
    %11 = vector.shape_cast %10 : vector<16xf32> to vector<16x1xf32>
    %12 = math.log %11 : vector<16x1xf32>
    %13 = arith.addf %6, %12 : vector<16x1xf32>
    %14 = tpu.iota {dimensions = array<i32: 1>} : vector<16x128xi32>
    %15 = vector.broadcast %4 : vector<16x1xi32> to vector<16x128xi32>
    %16 = arith.cmpi eq, %14, %15 : vector<16x128xi32>
    %cst_5 = arith.constant 3.906250e-04 : f32
    %cst_6 = arith.constant 0.949999988 : f32
    %17 = arith.addf %cst_5, %cst_6 : f32
    %cst_7 = arith.constant 3.906250e-04 : f32
    %18 = vector.broadcast %17 : f32 to vector<16x128xf32>
    %19 = vector.broadcast %cst_7 : f32 to vector<16x128xf32>
    %20 = arith.select %16, %18, %19 : vector<16x128xi1>, vector<16x128xf32>
    %21 = arith.mulf %20, %3 : vector<16x128xf32>
    %cst_8 = arith.constant dense<0.000000e+00> : vector<16xf32>
    %22 = vector.multi_reduction <add>, %21, %cst_8 [1] : vector<16x128xf32> to vector<16xf32>
    %23 = vector.shape_cast %22 : vector<16xf32> to vector<16x1xf32>
    %24 = arith.subf %13, %23 : vector<16x1xf32>
    %c1_i32 = arith.constant 1 : i32
    %25 = arith.muli %arg0, %c1_i32 : i32
    %26 = arith.addi %25, %arg1 : i32
    %c16_i32 = arith.constant 16 : i32
    %27 = arith.muli %26, %c16_i32 : i32
    %28 = tpu.iota {dimensions = array<i32: 0>} : vector<16x1xi32>
    %29 = vector.broadcast %27 : i32 to vector<16x1xi32>
    %30 = arith.addi %29, %28 : vector<16x1xi32>
    %c16_i32_9 = arith.constant 16 : i32
    %31 = vector.broadcast %c16_i32_9 : i32 to vector<16x1xi32>
    %32 = arith.cmpi slt, %30, %31 : vector<16x1xi32>
    %cst_10 = arith.constant 0.000000e+00 : f32
    %33 = vector.broadcast %cst_10 : f32 to vector<16x1xf32>
    %34 = arith.select %32, %24, %33 : vector<16x1xi1>, vector<16x1xf32>
    %c0_11 = arith.constant 0 : index
    %c0_12 = arith.constant 0 : index
    %35 = vector.load %arg5[%c0_11, %c0_12] : memref<16x1xf32, #tpu.memory_space<vmem>>, vector<16x1xf32>
    %36 = arith.addf %35, %34 : vector<16x1xf32>
    %c0_13 = arith.constant 0 : index
    %c0_14 = arith.constant 0 : index
    %37 = vector.load %arg5[%c0_13, %c0_14] : memref<16x1xf32, #tpu.memory_space<vmem>>, vector<16x1xf32>
    tpu.vector_store %arg5[%c0_13, %c0_14], %36 {strides = array<i32>} : memref<16x1xf32, #tpu.memory_space<vmem>>, vector<16x1xf32>,
    %c0_i32_15 = arith.constant 0 : i32
    %38 = arith.cmpi eq, %arg1, %c0_i32_15 : i32
    %39 = arith.extui %38 : i1 to i32
    %c0_i32_16 = arith.constant 0 : i32
    %40 = arith.cmpi ne, %39, %c0_i32_16 : i32
    scf.if %40 {
      %c0_17 = arith.constant 0 : index
      %c0_18 = arith.constant 0 : index
      %41 = vector.load %arg5[%c0_17, %c0_18] : memref<16x1xf32, #tpu.memory_space<vmem>>, vector<16x1xf32>
      %42 = vector.shape_cast %41 : vector<16x1xf32> to vector<1x16x1xf32>
      %cst_19 = arith.constant dense<0.000000e+00> : vector<1xf32>
      %43 = vector.multi_reduction <add>, %42, %cst_19 [1, 2] : vector<1x16x1xf32> to vector<1xf32>
      %44 = vector.shape_cast %43 : vector<1xf32> to vector<1x1x1xf32>
      %45 = vector.extract %44[0, 0, 0] : f32 from vector<1x1x1xf32>
      %46 = vector.broadcast %45 : f32 to vector<1x8x128xf32>
      %c0_20 = arith.constant 0 : index
      %c0_21 = arith.constant 0 : index
      %c0_22 = arith.constant 0 : index
      %47 = vector.load %arg4[%c0_20, %c0_21, %c0_22] : memref<1x8x128xf32, #tpu.memory_space<vmem>>, vector<1x8x128xf32>
      tpu.vector_store %arg4[%c0_20, %c0_21, %c0_22], %46 {strides = array<i32>} : memref<1x8x128xf32, #tpu.memory_space<vmem>>, vector<1x8x128xf32>,
    } else {
    }
    return
  }
  func.func @transform_0(%arg0: i32, %arg1: i32) -> (i32, i32) {
    %c1_i32 = arith.constant 1 : i32
    %0 = arith.muli %arg0, %c1_i32 : i32
    %1 = arith.addi %0, %arg1 : i32
    %c0_i32 = arith.constant 0 : i32
    %2 = arith.minsi %1, %c0_i32 : i32
    %c0_i32_0 = arith.constant 0 : i32
    %c0_i32_1 = arith.constant 0 : i32
    return %2, %c0_i32_0 : i32, i32
  }
  func.func @transform_1(%arg0: i32, %arg1: i32) -> (i32, i32) {
    %c1_i32 = arith.constant 1 : i32
    %0 = arith.muli %arg0, %c1_i32 : i32
    %1 = arith.addi %0, %arg1 : i32
    %c0_i32 = arith.constant 0 : i32
    %2 = arith.minsi %1, %c0_i32 : i32
    %c0_i32_0 = arith.constant 0 : i32
    %c0_i32_1 = arith.constant 0 : i32
    return %2, %c0_i32_0 : i32, i32
  }
  func.func @transform_2(%arg0: i32, %arg1: i32) -> (i32, i32, i32) {
    %c0_i32 = arith.constant 0 : i32
    %c0_i32_0 = arith.constant 0 : i32
    %c0_i32_1 = arith.constant 0 : i32
    return %arg0, %c0_i32, %c0_i32_0 : i32, i32, i32
  }
}

</mosaic_0001>

<llo_original>
// kernel: tpu_custom_call.1
$region0: #{tpu_custom_call.1}
  #allocation0 [shape = 'u32[]', space=smem, size = 0x4, offset = 0x4, fixed_abs, tag = 'smem constant byte address 0x4 - core index']
  #allocation1 [shape = 'u32[144,128]{1,0:T(1,128)}', space=vmem, size = 0x12000, scoped, tag = 'internal scratch']
  #allocation2 [shape = 'f32[16,1]{1,0:T(8,128)}', space=vmem, size = 0x2000, scoped, tag = 'scratch operand']
  %s0 = inlined_call_operand.vmem [shape: f32[16,128], index: 0, kind: input, shape index: {}]
  %s1 = inlined_call_operand.vmem [shape: s32[16,1], index: 1, kind: input, shape index: {}]
  %s2 = inlined_call_operand.hbm [shape: f32[1,8,128], index: 2, kind: output, shape index: {}]
  %s3 = sld [smem:[#allocation0]]
  $region26: #{tpu_custom_call.1} parent=0
    _
  %s5 = ssub.s32 1, %s3
  %s6 = scalar_select 0, %s5, %s3
  $region1: #{tpu_custom_call.1} parent=0
    #allocation3 [shape = 'u8[4096]{0}', space=vmem, size = 0x1000, scoped, tag = 'output window, operand 0, single buffered']
    #allocation4 [shape = 's32[1]{0}', space=sflag, size = 0x4, scoped, tag = 'scoped memory for tpu_custom_call.1']
    %7 = vsyncpa [#allocation4], 0
    // Predicated region
    $region2: #{tpu_custom_call.1} parent=1 // pred_check
      _
    $region3: #{tpu_custom_call.1} parent=1 // pred_check_branch
      %9 = sbr.rel (0) target = $region5
    $region4: #{tpu_custom_call.1} parent=1 // pred_region
      %s10 = sadd.s32 0, 0
      %p11 = scmp.lt.s32.totalorder %s10, 0
      %s12 = scalar_select %p11, %s10, 0
      %s13 = smul.u32 2, %s12
      %p14 = scmp.lt.s32.totalorder %s13, 1
      %s15 = scalar_select %p14, %s13, 1
      %s16 = smul.addr %s15, 8
      %s17 = scalar_lea.vmem %s0, %s16
      %s18 = sadd.s32 0, 0
      %p19 = scmp.lt.s32.totalorder %s18, 0
      %s20 = scalar_select %p19, %s18, 0
      %s21 = smul.u32 2, %s20
    $region5: #{tpu_custom_call.1} parent=1 // pred_fallthru
      _
    // Predicated region
    $region6: #{tpu_custom_call.1} parent=1 // pred_check
      _
    $region7: #{tpu_custom_call.1} parent=1 // pred_check_branch
      %23 = sbr.rel (0) target = $region9
    $region8: #{tpu_custom_call.1} parent=1 // pred_region
      %s24 = sadd.s32 0, 0
      %p25 = scmp.lt.s32.totalorder %s24, 0
      %s26 = scalar_select %p25, %s24, 0
      %s27 = smul.u32 2, %s26
      %p28 = scmp.lt.s32.totalorder %s27, 1
      %s29 = scalar_select %p28, %s27, 1
      %s30 = smul.addr %s29, 8
      %s31 = scalar_lea.vmem %s1, %s30
      %s32 = sadd.s32 0, 0
      %p33 = scmp.lt.s32.totalorder %s32, 0
      %s34 = scalar_select %p33, %s32, 0
      %s35 = smul.u32 2, %s34
    $region9: #{tpu_custom_call.1} parent=1 // pred_fallthru
      _
    %s36 = sadd.s32 0, 0
    %p37 = scmp.lt.s32.totalorder %s36, 0
    %s38 = scalar_select %p37, %s36, 0
    %s39 = smul.u32 2, %s38
    %p40 = scmp.lt.s32.totalorder %s39, 1
    %s41 = scalar_select %p40, %s39, 1
    %s42 = smul.addr %s41, 8
    %s43 = scalar_lea.vmem %s0, %s42
    %s44 = sadd.s32 0, 0
    %p45 = scmp.lt.s32.totalorder %s44, 0
    %s46 = scalar_select %p45, %s44, 0
    %s47 = smul.u32 2, %s46
    %p48 = scmp.lt.s32.totalorder %s47, 1
    %s49 = scalar_select %p48, %s47, 1
    %s50 = smul.addr %s49, 8
    %s51 = scalar_lea.vmem %s1, %s50
    %s52 = sadd.s32 0, 0
    %p53 = scmp.lt.s32.totalorder %s52, 0
    %s54 = scalar_select %p53, %s52, 0
    %s55 = smul.u32 2, %s54
    %p56 = scmp.lt.s32.totalorder %s55, 1
    %s57 = scalar_select %p56, %s55, 1
    %s58 = smul.addr %s57, 8
    %s59 = scalar_lea.vmem %s0, %s58
    %s60 = sadd.s32 0, 0
    %p61 = scmp.lt.s32.totalorder %s60, 0
    %s62 = scalar_select %p61, %s60, 0
    %s63 = smul.u32 2, %s62
    %s64 = sadd.s32 0, 0
    %p65 = scmp.lt.s32.totalorder %s64, 0
    %s66 = scalar_select %p65, %s64, 0
    %s67 = smul.u32 2, %s66
    %p68 = scmp.lt.s32.totalorder %s67, 1
    %s69 = scalar_select %p68, %s67, 1
    %s70 = smul.addr %s69, 8
    %s71 = scalar_lea.vmem %s1, %s70
    %s72 = sadd.s32 0, 0
    %p73 = scmp.lt.s32.totalorder %s72, 0
    %s74 = scalar_select %p73, %s72, 0
    %s75 = smul.u32 2, %s74
    %p76 = scmp.eq.s32.totalorder 0, 0
    // Predicated region
    $region10: #{tpu_custom_call.1} parent=1 // pred_check
      %p77 = pneg %p76
    $region11: #{tpu_custom_call.1} parent=1 // pred_check_branch
      %79 = sbr.rel (%p77) target = $region13
    $region12: #{tpu_custom_call.1} parent=1 // pred_region
      %vm80 = vcmask 7168
      %81 = vst.msk [vmem:[#allocation2] sm:$0xff] %vm80, 0.0
      %82 = vst.msk [vmem:[#allocation2 + $0x8] sm:$0xff] %vm80, 0.0
    $region13: #{tpu_custom_call.1} parent=1 // pred_fallthru
      _
    %v83 = vld [vmem:[%s59] sm:$0xff]
    %v84 = vld [vmem:[%s59 + $0x8] sm:$0xff]
    %v85 = vld [vmem:[%s71] sm:$0xff]
    %v86 = vld [vmem:[%s71 + $0x8] sm:$0xff]
    %87 = vmax.xlane.f32.xlu0 %v83
    %v88 = vpop.xlane.xlu0 %87
    %89 = vmax.xlane.f32.xlu0 %v84
    %v90 = vpop.xlane.xlu0 %89
    %v91 = vsub.f32 %v83, %v88
    %v92 = vsub.f32 %v84, %v90
    %v93 = vmul.f32 %v91, 1.442695
    %v94 = vpow.pop %v93
    %v95 = vmul.f32 %v92, 1.442695
    %v96 = vpow.pop %v95
    %97 = vadd.xlane.f32.xlu0 %v94
    %v98 = vpop.xlane.xlu0 %97
    %99 = vadd.xlane.f32.xlu0 %v96
    %v100 = vpop.xlane.xlu0 %99
    %v101 = vlog2.pop %v98
    %v102 = vmul.f32 %v101, 0.6931472
    %v103 = vlog2.pop %v100
    %v104 = vmul.f32 %v103, 0.6931472
    %v105 = vadd.f32 %v88, %v102
    %v106 = vadd.f32 %v90, %v104
    %v107 = vlaneseq
    %v108 = vand.u32 %v107, 127
    %109 = vset.pattern.permute.xlu0 0
    %110 = vperm.xlu0 %109, %v85
    %v111 = vpop.permute.xlu0 %110
    %112 = vset.pattern.permute.xlu0 0
    %113 = vperm.xlu0 %112, %v86
    %v114 = vpop.permute.xlu0 %113
    %vm115 = vcmp.eq.s32.totalorder %v108, %v111
    %vm116 = vcmp.eq.s32.totalorder %v108, %v114
    %v117 = vsel %vm115, 0.95039064, 0.000390625
    %v118 = vsel %vm116, 0.95039064, 0.000390625
    %v119 = vmul.f32 %v117, %v83
    %v120 = vmul.f32 %v118, %v84
    %121 = vadd.xlane.f32.xlu0 %v119
    %v122 = vpop.xlane.xlu0 %121
    %123 = vadd.xlane.f32.xlu0 %v120
    %v124 = vpop.xlane.xlu0 %123
    %v125 = vsub.f32 %v105, %v122
    %v126 = vsub.f32 %v106, %v124
    %s127 = sadd.s32 0, 0
    %s128 = smul.u32 %s127, 16
    %v129 = vlaneseq
    %v130 = vshrl.u32 %v129, 7
    %v131 = vadd.s32 %v130, 8
    %v132 = vstv %s128
    %v133 = vadd.s32 %v132, %v130
    %v134 = vadd.s32 %v132, %v131
    %vm135 = vcmp.lt.s32.totalorder %v133, 16
    %vm136 = vcmp.lt.s32.totalorder %v134, 16
    %v137 = vsel %vm135, %v125, 0.0
    %v138 = vsel %vm136, %v126, 0.0
    %v139 = vld [vmem:[#allocation2] sm:$0xff]
    %v140 = vld [vmem:[#allocation2 + $0x8] sm:$0xff]
    %v141 = vadd.f32 %v139, %v137
    %v142 = vadd.f32 %v140, %v138
    %vm143 = vcmask 7168
    %144 = vst.msk [vmem:[#allocation2] sm:$0xff] %vm143, %v141
    %145 = vst.msk [vmem:[#allocation2 + $0x8] sm:$0xff] %vm143, %v142
    // Predicated region
    $region14: #{tpu_custom_call.1} parent=1 // pred_check
      %p146 = pneg %p76
    $region15: #{tpu_custom_call.1} parent=1 // pred_check_branch
      %148 = sbr.rel (%p146) target = $region17
    $region16: #{tpu_custom_call.1} parent=1 // pred_region
      %v149 = vld [vmem:[#allocation2] sm:$0xff]
      %v150 = vld [vmem:[#allocation2 + $0x8] sm:$0xff]
      %v151 = vsel %vm143, %v149, 0.0
      %v152 = vsel %vm143, %v150, 0.0
      %v153 = vadd.f32 %v151, %v152
      %154 = vadd.xlane.f32.xlu0 %v153
      %v155 = vpop.xlane.xlu0 %154
      %v156 = vrot.slane %v155, 4
      %v157 = vadd.f32 %v155, %v156
      %v158 = vrot.slane %v157, 2
      %v159 = vadd.f32 %v157, %v158
      %v160 = vrot.slane %v159, 1
      %v161 = vadd.f32 %v159, %v160
      %s162 = vtos %v161
      %v163 = vstv %s162
      %164 = vst [vmem:[#allocation3] sm:$0xff] %v163
    $region17: #{tpu_custom_call.1} parent=1 // pred_fallthru
      _
    // Predicated region
    $region18: #{tpu_custom_call.1} parent=1 // pred_check
      _
    $region19: #{tpu_custom_call.1} parent=1 // pred_check_branch
      %166 = sbr.rel (0) target = $region21
    $region20: #{tpu_custom_call.1} parent=1 // pred_region
      %s168 = ssub.s32 128, 128
      %169 = vsyncadd [#allocation4], %s168
      %s171 = sshll.u32 [#allocation3], 4
      %s172 = int_to_ptr.vmem [resolvable:$true] %s171
      %174 = dma.vmem_to_hbm [thread:$0]  %s172, 128, %s2, [#allocation4]
    $region21: #{tpu_custom_call.1} parent=1 // pred_fallthru
      _
    // Predicated region
    $region22: #{tpu_custom_call.1} parent=1 // pred_check
      _
    $region23: #{tpu_custom_call.1} parent=1 // pred_check_branch
      %176 = sbr.rel (0) target = $region25
    $region24: #{tpu_custom_call.1} parent=1 // pred_region
      %177 = dma.done [#allocation4], 128
    $region25: #{tpu_custom_call.1} parent=1 // pred_fallthru
      _
    %178 = vsyncpa [#allocation4], 1

</llo_original>
